<compile_context>
chip_gen: v7x
topology: tpu7x:2x2x1
jax: 0.10.0
libtpu: 0.0.40
codegen_flags: <defaults>
</compile_context>

<pallas_src>
import jax
import jax.numpy as jnp
from jax.experimental import pallas as pl
from jax.experimental.pallas import tpu as pltpu


# ----------------------------------------------------------------------------------
# Kernels
# ----------------------------------------------------------------------------------
def _zcb_kernel_mxu(cb_ref, x_ref, p1_ref, p2_ref, p3_ref, p4_ref, p5_ref, p6_ref,
                    out_ref, st_ref):
    """MXU path: stage the 7 state tiles (+ a ones row for the bias) as an (8, TILE_N)
    VMEM tile and contract with the (T_len, 8) loading table on the MXU.

    cb_ref  : (T_len, 8)   columns = [Bx, Bphi1..Bphi6, ln P(0,T)]   (grid-constant)
    state   : (1, TILE_N)  one path tile per state variable
    out_ref : (T_len, TILE_N)
    st_ref  : (8, TILE_N)  VMEM scratch (staging for the MXU contraction)
    """
    st_ref[0:1, :] = x_ref[...]
    st_ref[1:2, :] = p1_ref[...]
    st_ref[2:3, :] = p2_ref[...]
    st_ref[3:4, :] = p3_ref[...]
    st_ref[4:5, :] = p4_ref[...]
    st_ref[5:6, :] = p5_ref[...]
    st_ref[6:7, :] = p6_ref[...]
    st_ref[7:8, :] = jnp.ones_like(x_ref[...])          # bias row: logp += bias * 1
    logp = jnp.dot(cb_ref[...], st_ref[...],
                   preferred_element_type=jnp.float32,
                   precision=jax.lax.Precision.HIGHEST)  # (T_len, TILE_N), MXU
    out_ref[...] = jnp.exp(logp).astype(out_ref.dtype)   # EUP exp + (optional) bf16 cast


def _zcb_kernel_vpu(cb_ref, x_ref, p1_ref, p2_ref, p3_ref, p4_ref, p5_ref, p6_ref,
                    out_ref):
    """VPU fallback (recommended on v5e): unrolled broadcast-FMAs, no MXU."""
    cb = cb_ref[...]                                      # (T_len, 8)
    logp = cb[:, 7:8] + cb[:, 0:1] * x_ref[...]           # bias + Bx * x
    logp = logp + cb[:, 1:2] * p1_ref[...]
    logp = logp + cb[:, 2:3] * p2_ref[...]
    logp = logp + cb[:, 3:4] * p3_ref[...]
    logp = logp + cb[:, 4:5] * p4_ref[...]
    logp = logp + cb[:, 5:6] * p5_ref[...]
    logp = logp + cb[:, 6:7] * p6_ref[...]
    out_ref[...] = jnp.exp(logp).astype(out_ref.dtype)


# ----------------------------------------------------------------------------------
# Closed-form Trolle-Schwartz bond-price loadings (plain-JAX glue, length T_len)
# ----------------------------------------------------------------------------------
def ts_zcb_loadings(tau, alpha0, alpha1, gamma, varphi):
    """Closed-form Trolle-Schwartz (2009) bond-price loadings B_x, B_phi1..B_phi6.

    Derived from sigma_f(t,T) = (alpha0 + alpha1*(T-t)) * exp(-gamma*(T-t)) and the
    state SDEs dphi1=(x-g*phi1)dt, dphi2=(v-g*phi2)dt, dphi3=(v-2g*phi3)dt,
    dphi4=(phi2-g*phi4)dt, dphi5=(phi3-2g*phi5)dt, dphi6=(2phi5-2g*phi6)dt.
    The ZCB does not depend on the instantaneous variance v, so no v column.
    """
    tau = tau.astype(jnp.float32)
    g = gamma
    E = jnp.exp(-g * tau)
    E2 = jnp.exp(-2.0 * g * tau)

    A = alpha0 / g + alpha1 / (g * g)
    Bc = alpha1 / g

    Bx = Bc * ((1.0 / g + alpha0 / alpha1) * (E - 1.0) + tau * E)
    Bphi1 = Bc * (E - 1.0)
    Bphi2 = A * Bx
    Bphi4 = A * Bphi1

    I0 = (1.0 - E2) / (2.0 * g)
    I1 = (1.0 - E2 * (1.0 + 2.0 * g * tau)) / (4.0 * g * g)
    I2 = (2.0 - E2 * (2.0 + 4.0 * g * tau + 4.0 * (g * tau) ** 2)) / (8.0 * g ** 3)

    Bphi3 = alpha0 * A * I0 + (alpha1 * A + alpha0 * Bc) * I1 + alpha1 * Bc * I2
    Bphi5 = (alpha1 * A + alpha0 * Bc) * I0 + 2.0 * alpha1 * Bc * I1
    Bphi6 = alpha1 * Bc * I0

    # column order matches the kernel: [x, phi1, phi2, phi3, phi4, phi5, phi6]
    coef = jnp.stack([Bx, Bphi1, Bphi2, Bphi3, Bphi4, Bphi5, Bphi6], axis=-1)
    # TODO(synk): the reference forward calls a module-global `mdl.calc_zcb`; the bias
    # row assumes a flat forward curve ln P(0,T) = -varphi*T (same parameters as here).
    bias = (-varphi * tau)[:, None]
    return coef.astype(jnp.float32), bias.astype(jnp.float32)


# ----------------------------------------------------------------------------------
# Wrapper (ZcbAAD.forward equivalent, t = 0)
# ----------------------------------------------------------------------------------
def zcb_forward(xt, vt, phi1t, phi2t, phi3t, phi4t, phi5t, phi6t,
                tenor, kappa, theta, rho, sigma, alpha0, alpha1, gamma, varphi,
                simDim: int = 1, tile_n: int = 32768,
                out_dtype=jnp.float32, use_mxu: bool = True):
    """Pallas equivalent of ZcbAAD.forward (t = 0).

    out_dtype=jnp.bfloat16 halves writeback HBM traffic (~25% wall-clock where
    memory-bound); default float32 keeps exact parity with the reference module.
    use_mxu=False selects the pure-VPU fallback (recommended on v5e).
    """
    # kappa/theta/rho/sigma drive the variance dynamics only; vt has a zero loading
    # in P(t,T) — none of them enter the forward output, so none are read.
    del kappa, theta, rho, sigma, vt

    # TODO(synk): if the upstream simulation can emit the states already packed as one
    # (simDim, 7, N) array (without an extra stack pass), a single BlockSpec input
    # would cut per-step DMA descriptors from 8 to 2 and make the MXU staging free.
    states = [jnp.asarray(a, jnp.float32)
              for a in (xt, phi1t, phi2t, phi3t, phi4t, phi5t, phi6t)]
    simD, n_paths = states[0].shape
    assert simD == simDim

    tau = jnp.asarray(tenor, jnp.float32) - 0.0              # t = 0
    t_len = int(tau.shape[0])
    coef, bias = ts_zcb_loadings(tau, alpha0, alpha1, gamma, varphi)
    cb = jnp.concatenate([coef, bias], axis=-1)              # (T_len, 8)

    # ---- path tile size: lane-dense multiple of 128, large enough to amortize the
    # ~0.35 us per-grid-step overhead, small enough to give >= 4 tiles (v7x megacore
    # sharding + pipeline depth) whenever N allows. ----
    if n_paths <= 128:
        tn = n_paths
    else:
        tn = min(int(tile_n), n_paths)
        quarter = (n_paths // 4 // 128) * 128                # >= 4 tiles when possible
        if quarter >= 128:
            tn = min(tn, quarter)
        tn = max(128, (tn // 128) * 128)

    grid = (simD, pl.cdiv(n_paths, tn))

    out_bytes = jnp.dtype(out_dtype).itemsize
    # Double-buffered in/out tiles + single-buffered MXU staging scratch.
    est_vmem = 2 * (7 * tn * 4 + t_len * tn * out_bytes + t_len * 8 * 4)
    if use_mxu:
        est_vmem += 8 * tn * 4
    # Only raise the scoped-VMEM limit when a big user tile would collide with v5e's
    # 16 MiB default (v6e/v7x defaults are 32 MiB).
    vmem_limit = int(est_vmem * 5 // 4) if est_vmem > 12 * (1 << 20) else None

    cost = pl.CostEstimate(
        flops=2 * 8 * simD * t_len * n_paths,
        transcendentals=simD * t_len * n_paths,
        bytes_accessed=7 * 4 * simD * n_paths + t_len * 8 * 4
                       + simD * t_len * n_paths * out_bytes)

    state_spec = pl.BlockSpec((1, tn), lambda b, j: (b, j))
    in_specs = [pl.BlockSpec((t_len, 8), lambda b, j: (0, 0))] + [state_spec] * 7
    out_spec = pl.BlockSpec((None, t_len, tn), lambda b, j: (b, 0, j))

    kernel = _zcb_kernel_mxu if use_mxu else _zcb_kernel_vpu
    scratch = [pltpu.VMEM((8, tn), jnp.float32)] if use_mxu else []

    zcb = pl.pallas_call(
        kernel,
        out_shape=jax.ShapeDtypeStruct((simD, t_len, n_paths), out_dtype),
        grid=grid,
        in_specs=in_specs,
        out_specs=out_spec,
        scratch_shapes=scratch,
        compiler_params=pltpu.CompilerParams(
            dimension_semantics=("parallel", "parallel"),
            vmem_limit_bytes=vmem_limit),
        cost_estimate=cost,
    )(cb, *states)
    return zcb


def _zcb_reference(states7, coef, bias):
    # pure-JAX reference: exp(contraction over the 7 nonzero-loading states + bias)
    return jnp.exp(
        jnp.einsum("tk,bkn->btn", coef, states7,
                   precision=jax.lax.Precision.HIGHEST)
        + bias[None, :, :])


if __name__ == "__main__":
    key = jax.random.PRNGKey(0)
    simDim, N, T_len = 1, 512, 8

    keys = jax.random.split(key, 8)
    xt = 0.05 * jax.random.normal(keys[0], (simDim, N), jnp.float32)
    vt = 0.02 + 0.01 * jax.random.uniform(keys[1], (simDim, N), jnp.float32)
    phi1t = 0.02 * jax.random.normal(keys[2], (simDim, N), jnp.float32)
    phi2t = 0.02 * jax.random.normal(keys[3], (simDim, N), jnp.float32)
    phi3t = 0.02 * jax.random.normal(keys[4], (simDim, N), jnp.float32)
    phi4t = 0.02 * jax.random.normal(keys[5], (simDim, N), jnp.float32)
    phi5t = 0.02 * jax.random.normal(keys[6], (simDim, N), jnp.float32)
    phi6t = 0.02 * jax.random.normal(keys[7], (simDim, N), jnp.float32)

    tenor = jnp.arange(1, T_len + 1, dtype=jnp.float32) * 0.25   # 0.25 .. 2.0 years

    # Trolle-Schwartz style parameters (deterministic, in-script)
    kappa, theta, rho, sigma = 0.0553, 0.7542, 0.4615, 3.0325
    alpha0, alpha1, gamma, varphi = 0.045, 0.131, 0.3341, 0.0832

    args = (xt, vt, phi1t, phi2t, phi3t, phi4t, phi5t, phi6t,
            tenor, kappa, theta, rho, sigma, alpha0, alpha1, gamma, varphi)

    # pure-JAX reference (vt has a zero loading by construction)
    states7 = jnp.stack([xt, phi1t, phi2t, phi3t, phi4t, phi5t, phi6t], axis=1)
    coef, bias = ts_zcb_loadings(tenor, alpha0, alpha1, gamma, varphi)
    ref = _zcb_reference(states7.astype(jnp.float32), coef, bias)

    # 1) default path (MXU contraction, f32 output).  The >=4-tile guard auto-clamps
    #    the tile to 128 here, exercising the multi-tile pipeline even at small N.
    zcb = jax.block_until_ready(zcb_forward(*args, simDim=simDim))
    assert zcb.shape == (simDim, T_len, N)
    assert bool(jnp.all(jnp.isfinite(zcb)))
    assert bool(jnp.allclose(zcb, ref, rtol=1e-4, atol=1e-6))

    # 2) VPU fallback (v5e path) — same numbers.
    zcb_vpu = jax.block_until_ready(zcb_forward(*args, simDim=simDim, use_mxu=False))
    assert bool(jnp.allclose(zcb_vpu, ref, rtol=1e-4, atol=1e-6))

    # 3) bf16 writeback variant (halves output HBM traffic); looser tolerance.
    zcb_bf16 = jax.block_until_ready(
        zcb_forward(*args, simDim=simDim, out_dtype=jnp.bfloat16))
    assert zcb_bf16.dtype == jnp.bfloat16
    assert bool(jnp.allclose(zcb_bf16.astype(jnp.float32), ref, rtol=1e-2, atol=1e-2))

    print("KERNEL_OK")
</pallas_src>

<mosaic_0001>
module attributes {stable_mosaic.version = 11 : i64} {
  func.func @_zcb_kernel_mxu(%arg0: i32, %arg1: i32, %arg2: memref<8x8xf32, #tpu.memory_space<vmem>>, %arg3: memref<1x128xf32, #tpu.memory_space<vmem>>, %arg4: memref<1x128xf32, #tpu.memory_space<vmem>>, %arg5: memref<1x128xf32, #tpu.memory_space<vmem>>, %arg6: memref<1x128xf32, #tpu.memory_space<vmem>>, %arg7: memref<1x128xf32, #tpu.memory_space<vmem>>, %arg8: memref<1x128xf32, #tpu.memory_space<vmem>>, %arg9: memref<1x128xf32, #tpu.memory_space<vmem>>, %arg10: memref<1x8x128xf32, #tpu.memory_space<vmem>>, %arg11: memref<8x128xf32, #tpu.memory_space<vmem>>) attributes {dimension_semantics = [#tpu.dimension_semantics<parallel>, #tpu.dimension_semantics<parallel>], iteration_bounds = array<i64: 1, 4>, scalar_prefetch = 0 : i64, scratch_operands = 1 : i64, tpu.core_type = #tpu.core_type<tc>, window_params = [{pipeline_mode = #tpu.pipeline_mode<synchronous>, transform_indices = @transform_0, window_bounds = array<i64: 8, 8>}, {transform_indices = @transform_1, window_bounds = array<i64: 1, 128>}, {transform_indices = @transform_2, window_bounds = array<i64: 1, 128>}, {transform_indices = @transform_3, window_bounds = array<i64: 1, 128>}, {transform_indices = @transform_4, window_bounds = array<i64: 1, 128>}, {transform_indices = @transform_5, window_bounds = array<i64: 1, 128>}, {transform_indices = @transform_6, window_bounds = array<i64: 1, 128>}, {transform_indices = @transform_7, window_bounds = array<i64: 1, 128>}, {transform_indices = @transform_8, window_bounds = array<i64: 1, 8, 128>}]} {
    %c0 = arith.constant 0 : index
    %c0_0 = arith.constant 0 : index
    %0 = vector.load %arg3[%c0, %c0_0] : memref<1x128xf32, #tpu.memory_space<vmem>>, vector<1x128xf32>
    %c0_1 = arith.constant 0 : index
    %c0_2 = arith.constant 0 : index
    %1 = vector.load %arg11[%c0_1, %c0_2] : memref<8x128xf32, #tpu.memory_space<vmem>>, vector<1x128xf32>
    tpu.vector_store %arg11[%c0_1, %c0_2], %0 {strides = array<i32>} : memref<8x128xf32, #tpu.memory_space<vmem>>, vector<1x128xf32>,
    %c0_3 = arith.constant 0 : index
    %c0_4 = arith.constant 0 : index
    %2 = vector.load %arg4[%c0_3, %c0_4] : memref<1x128xf32, #tpu.memory_space<vmem>>, vector<1x128xf32>
    %c1 = arith.constant 1 : index
    %c0_5 = arith.constant 0 : index
    %3 = vector.load %arg11[%c1, %c0_5] : memref<8x128xf32, #tpu.memory_space<vmem>>, vector<1x128xf32>
    tpu.vector_store %arg11[%c1, %c0_5], %2 {strides = array<i32>} : memref<8x128xf32, #tpu.memory_space<vmem>>, vector<1x128xf32>,
    %c0_6 = arith.constant 0 : index
    %c0_7 = arith.constant 0 : index
    %4 = vector.load %arg5[%c0_6, %c0_7] : memref<1x128xf32, #tpu.memory_space<vmem>>, vector<1x128xf32>
    %c2 = arith.constant 2 : index
    %c0_8 = arith.constant 0 : index
    %5 = vector.load %arg11[%c2, %c0_8] : memref<8x128xf32, #tpu.memory_space<vmem>>, vector<1x128xf32>
    tpu.vector_store %arg11[%c2, %c0_8], %4 {strides = array<i32>} : memref<8x128xf32, #tpu.memory_space<vmem>>, vector<1x128xf32>,
    %c0_9 = arith.constant 0 : index
    %c0_10 = arith.constant 0 : index
    %6 = vector.load %arg6[%c0_9, %c0_10] : memref<1x128xf32, #tpu.memory_space<vmem>>, vector<1x128xf32>
    %c3 = arith.constant 3 : index
    %c0_11 = arith.constant 0 : index
    %7 = vector.load %arg11[%c3, %c0_11] : memref<8x128xf32, #tpu.memory_space<vmem>>, vector<1x128xf32>
    tpu.vector_store %arg11[%c3, %c0_11], %6 {strides = array<i32>} : memref<8x128xf32, #tpu.memory_space<vmem>>, vector<1x128xf32>,
    %c0_12 = arith.constant 0 : index
    %c0_13 = arith.constant 0 : index
    %8 = vector.load %arg7[%c0_12, %c0_13] : memref<1x128xf32, #tpu.memory_space<vmem>>, vector<1x128xf32>
    %c4 = arith.constant 4 : index
    %c0_14 = arith.constant 0 : index
    %9 = vector.load %arg11[%c4, %c0_14] : memref<8x128xf32, #tpu.memory_space<vmem>>, vector<1x128xf32>
    tpu.vector_store %arg11[%c4, %c0_14], %8 {strides = array<i32>} : memref<8x128xf32, #tpu.memory_space<vmem>>, vector<1x128xf32>,
    %c0_15 = arith.constant 0 : index
    %c0_16 = arith.constant 0 : index
    %10 = vector.load %arg8[%c0_15, %c0_16] : memref<1x128xf32, #tpu.memory_space<vmem>>, vector<1x128xf32>
    %c5 = arith.constant 5 : index
    %c0_17 = arith.constant 0 : index
    %11 = vector.load %arg11[%c5, %c0_17] : memref<8x128xf32, #tpu.memory_space<vmem>>, vector<1x128xf32>
    tpu.vector_store %arg11[%c5, %c0_17], %10 {strides = array<i32>} : memref<8x128xf32, #tpu.memory_space<vmem>>, vector<1x128xf32>,
    %c0_18 = arith.constant 0 : index
    %c0_19 = arith.constant 0 : index
    %12 = vector.load %arg9[%c0_18, %c0_19] : memref<1x128xf32, #tpu.memory_space<vmem>>, vector<1x128xf32>
    %c6 = arith.constant 6 : index
    %c0_20 = arith.constant 0 : index
    %13 = vector.load %arg11[%c6, %c0_20] : memref<8x128xf32, #tpu.memory_space<vmem>>, vector<1x128xf32>
    tpu.vector_store %arg11[%c6, %c0_20], %12 {strides = array<i32>} : memref<8x128xf32, #tpu.memory_space<vmem>>, vector<1x128xf32>,
    %cst = arith.constant 1.000000e+00 : f32
    %14 = vector.broadcast %cst : f32 to vector<1x128xf32>
    %c7 = arith.constant 7 : index
    %c0_21 = arith.constant 0 : index
    %15 = vector.load %arg11[%c7, %c0_21] : memref<8x128xf32, #tpu.memory_space<vmem>>, vector<1x128xf32>
    tpu.vector_store %arg11[%c7, %c0_21], %14 {strides = array<i32>} : memref<8x128xf32, #tpu.memory_space<vmem>>, vector<1x128xf32>,
    %c0_22 = arith.constant 0 : index
    %c0_23 = arith.constant 0 : index
    %16 = vector.load %arg2[%c0_22, %c0_23] : memref<8x8xf32, #tpu.memory_space<vmem>>, vector<8x8xf32>
    %c0_24 = arith.constant 0 : index
    %c0_25 = arith.constant 0 : index
    %17 = vector.load %arg11[%c0_24, %c0_25] : memref<8x128xf32, #tpu.memory_space<vmem>>, vector<8x128xf32>
    %cst_26 = arith.constant dense<0.000000e+00> : vector<8x128xf32>
    %18 = tpu.matmul %16, %17, %cst_26 {dimension_numbers = #tpu.dot_dimension_numbers<[1], [0], [0], [1], [0, 0, 1, 1], [], []>, precision = #tpu.contract_precision<fp32>} : vector<8x8xf32>, vector<8x128xf32>, vector<8x128xf32> -> vector<8x128xf32>
    %19 = math.exp %18 : vector<8x128xf32>
    %c0_27 = arith.constant 0 : index
    %c0_28 = arith.constant 0 : index
    %c0_29 = arith.constant 0 : index
    %20 = vector.load %arg10[%c0_27, %c0_28, %c0_29] : memref<1x8x128xf32, #tpu.memory_space<vmem>>, vector<1x8x128xf32>
    %21 = vector.shape_cast %20 : vector<1x8x128xf32> to vector<8x128xf32>
    %22 = vector.shape_cast %19 : vector<8x128xf32> to vector<1x8x128xf32>
    tpu.vector_store %arg10[%c0_27, %c0_28, %c0_29], %22 {strides = array<i32>} : memref<1x8x128xf32, #tpu.memory_space<vmem>>, vector<1x8x128xf32>,
    return
  }
  func.func @transform_0(%arg0: i32, %arg1: i32) -> (i32, i32) {
    %c0_i32 = arith.constant 0 : i32
    %c0_i32_0 = arith.constant 0 : i32
    %c0_i32_1 = arith.constant 0 : i32
    return %c0_i32, %c0_i32_0 : i32, i32
  }
  func.func @transform_1(%arg0: i32, %arg1: i32) -> (i32, i32) {
    %c0_i32 = arith.constant 0 : i32
    return %arg0, %arg1 : i32, i32
  }
  func.func @transform_2(%arg0: i32, %arg1: i32) -> (i32, i32) {
    %c0_i32 = arith.constant 0 : i32
    return %arg0, %arg1 : i32, i32
  }
  func.func @transform_3(%arg0: i32, %arg1: i32) -> (i32, i32) {
    %c0_i32 = arith.constant 0 : i32
    return %arg0, %arg1 : i32, i32
  }
  func.func @transform_4(%arg0: i32, %arg1: i32) -> (i32, i32) {
    %c0_i32 = arith.constant 0 : i32
    return %arg0, %arg1 : i32, i32
  }
  func.func @transform_5(%arg0: i32, %arg1: i32) -> (i32, i32) {
    %c0_i32 = arith.constant 0 : i32
    return %arg0, %arg1 : i32, i32
  }
  func.func @transform_6(%arg0: i32, %arg1: i32) -> (i32, i32) {
    %c0_i32 = arith.constant 0 : i32
    return %arg0, %arg1 : i32, i32
  }
  func.func @transform_7(%arg0: i32, %arg1: i32) -> (i32, i32) {
    %c0_i32 = arith.constant 0 : i32
    return %arg0, %arg1 : i32, i32
  }
  func.func @transform_8(%arg0: i32, %arg1: i32) -> (i32, i32, i32) {
    %c0_i32 = arith.constant 0 : i32
    %c0_i32_0 = arith.constant 0 : i32
    return %arg0, %c0_i32, %arg1 : i32, i32, i32
  }
}

</mosaic_0001>

<llo_original>
// kernel: tpu_custom_call.1
$region0: #{tpu_custom_call.1}
  #allocation0 [shape = 'u32[]', space=smem, size = 0x4, offset = 0x4, fixed_abs, tag = 'smem constant byte address 0x4 - core index']
  #allocation1 [shape = 'u32[144,128]{1,0:T(1,128)}', space=vmem, size = 0x12000, scoped, tag = 'internal scratch']
  #allocation2 [shape = 'f32[8,128]{1,0:T(8,128)}', space=vmem, size = 0x1000, scoped, tag = 'scratch operand']
  %s0 = inlined_call_operand.hbm [shape: f32[8,8], index: 0, kind: input, shape index: {}]
  %s1 = inlined_call_operand.hbm [shape: f32[1,512], index: 1, kind: input, shape index: {}]
  %s2 = inlined_call_operand.vmem [shape: f32[1,512], index: 2, kind: input, shape index: {}]
  %s3 = inlined_call_operand.vmem [shape: f32[1,512], index: 3, kind: input, shape index: {}]
  %s4 = inlined_call_operand.vmem [shape: f32[1,512], index: 4, kind: input, shape index: {}]
  %s5 = inlined_call_operand.vmem [shape: f32[1,512], index: 5, kind: input, shape index: {}]
  %s6 = inlined_call_operand.vmem [shape: f32[1,512], index: 6, kind: input, shape index: {}]
  %s7 = inlined_call_operand.vmem [shape: f32[1,512], index: 7, kind: input, shape index: {}]
  %s8 = inlined_call_operand.hbm [shape: f32[1,8,512], index: 8, kind: output, shape index: {}]
  %s9 = sld [smem:[#allocation0]]
  $region73: #{tpu_custom_call.1} parent=0
    _
  %s11 = ssub.s32 1, %s9
  %s12 = scalar_select 0, %s11, %s9
  $region1: #{tpu_custom_call.1} parent=0
    #allocation3 [shape = 'u8[4096]{0}', space=vmem, size = 0x1000, scoped, tag = 'input window, operand 0, single buffered']
    #allocation4 [shape = 's32[2]{0}', space=sflag, size = 0x8, scoped, tag = 'scoped memory for tpu_custom_call.1']
    #allocation5 [shape = 's32[2]{0}', space=sflag, size = 0x8, scoped, tag = 'scoped memory for tpu_custom_call.1']
    #allocation6 [shape = 'u8[1024]{0}', space=vmem, size = 0x400, scoped, tag = 'input window, operand 1']
    #allocation7 [shape = 's32[2]{0}', space=sflag, size = 0x8, scoped, tag = 'scoped memory for tpu_custom_call.1']
    #allocation8 [shape = 'u8[8192]{0}', space=vmem, size = 0x2000, scoped, tag = 'output window, operand 0']
    %13 = vsyncpa [#allocation4], 0
    %14 = vsyncpa [#allocation7], 0
    %s15 = scalar_lea.sflag [#allocation7], 1
    %16 = vsyncpa %s15, 0
    %17 = vsyncpa [#allocation5], 0
    %s18 = scalar_lea.sflag [#allocation5], 1
    %19 = vsyncpa %s18, 0
    loop: start=0, step=1, limit=6
    $region2: #{tpu_custom_call.1} parent=1 // loop_pre_header
      _
    $region3: #{tpu_custom_call.1} parent=1 // loop_header
      %s21 = sphi 0, %s25
      %p22 = scmp.ge.s32.totalorder %s21, 6
      %s28 = sphi 0, %s40
      %s29 = sphi 0, %s36
      %s30 = sphi 0, %s28
      %s31 = sphi 0, %s29
      %s32 = sphi 0, %s30
      %s33 = sphi 0, %s31
      %s41 = sphi 0, %s41
      %s43 = sphi 0, %s41
      %s44 = sphi 0, %s43
      %s58 = sphi 0, %s44
      %s66 = sphi 0, %s68
      %s69 = sphi 0, %s66
      %s70 = sphi 0, %s69
      %s86 = sphi 0, %s70
      %s94 = sphi 0, %s96
      %s97 = sphi 0, %s94
      %s98 = sphi 0, %s97
      %s114 = sphi 0, %s98
      %s122 = sphi 0, %s124
      %s125 = sphi 0, %s122
      %s126 = sphi 0, %s125
      %s142 = sphi 0, %s126
      %s150 = sphi 0, %s152
      %s153 = sphi 0, %s150
      %s154 = sphi 0, %s153
      %s170 = sphi 0, %s154
      %s178 = sphi 0, %s180
      %s181 = sphi 0, %s178
      %s182 = sphi 0, %s181
      %s198 = sphi 0, %s182
      %s206 = sphi 0, %s208
      %s209 = sphi 0, %s206
      %s210 = sphi 0, %s209
      %s226 = sphi 0, %s210
      %s234 = sphi 0, %s236
      %s237 = sphi 0, %s234
      %s238 = sphi 0, %s237
      %s254 = sphi 0, %s238
      %s262 = sphi 0, %s264
      %s265 = sphi 0, %s262
      %s266 = sphi 0, %s265
      %s282 = sphi 0, %s266
    $region4: #{tpu_custom_call.1} parent=1 // loop_header_branch
      %24 = sbr.rel (%p22) target = $region8
    $region5: #{tpu_custom_call.1} parent=1 // loop_body
      %s26 = ssub.s32 %s21, 1
      %s27 = ssub.s32 %s21, 2
      %s34 = sadd.s32 1, %s29
      %p35 = scmp.ge.s32.totalorder %s34, 4
      %s36 = scalar_select %p35, 0, %s34
      %s37 = sadd.s32 1, %s28
      %s38 = scalar_select %p35, %s37, %s28
      %p39 = scmp.ge.s32.totalorder %s38, 1
      %s40 = scalar_select %p39, 0, %s38
      %s42 = sadd.s32 %s41, 1
      %p45 = scmp.eq.s32.totalorder %s21, 3
      %p46 = scmp.ne.s32.totalorder %s41, %s43
      %p47 = scmp.eq.s32.totalorder %s21, 0
      %p48 = por %p46, %p47
      %p49 = scmp.ne.s32.totalorder %s41, %s43
      %p50 = scmp.eq.s32.totalorder %s26, 3
      %p51 = por %p49, %p50
      %p52 = scmp.ne.s32.totalorder %s43, %s44
      %p53 = scmp.eq.s32.totalorder %s26, 0
      %p54 = por %p52, %p53
      %p55 = scmp.ne.s32.totalorder %s43, %s44
      %p56 = scmp.eq.s32.totalorder %s27, 3
      %p57 = por %p55, %p56
      %p59 = scmp.ne.s32.totalorder %s44, %s58
      %p60 = scmp.eq.s32.totalorder %s27, 0
      %p61 = por %p59, %p60
      %s62 = ssub.s32 %s28, %s40
      %s63 = ssub.s32 %s29, %s36
      %s64 = sor.u32 %s62, %s63
      %p65 = scmp.eq.s32.totalorder %s64, 0
      %s67 = sadd.s32 %s66, 1
      %s68 = scalar_select %p65, %s66, %s67
      %p71 = pneg %p65
      %p72 = scmp.eq.s32.totalorder %s21, 3
      %p73 = por %p71, %p72
      %p74 = scmp.ne.s32.totalorder %s66, %s69
      %p75 = scmp.eq.s32.totalorder %s21, 0
      %p76 = por %p74, %p75
      %p77 = scmp.ne.s32.totalorder %s66, %s69
      %p78 = scmp.eq.s32.totalorder %s26, 3
      %p79 = por %p77, %p78
      %p80 = scmp.ne.s32.totalorder %s69, %s70
      %p81 = scmp.eq.s32.totalorder %s26, 0
      %p82 = por %p80, %p81
      %p83 = scmp.ne.s32.totalorder %s69, %s70
      %p84 = scmp.eq.s32.totalorder %s27, 3
      %p85 = por %p83, %p84
      %p87 = scmp.ne.s32.totalorder %s70, %s86
      %p88 = scmp.eq.s32.totalorder %s27, 0
      %p89 = por %p87, %p88
      %s90 = ssub.s32 %s28, %s40
      %s91 = ssub.s32 %s29, %s36
      %s92 = sor.u32 %s90, %s91
      %p93 = scmp.eq.s32.totalorder %s92, 0
      %s95 = sadd.s32 %s94, 1
      %s96 = scalar_select %p93, %s94, %s95
      %p99 = pneg %p93
      %p100 = scmp.eq.s32.totalorder %s21, 3
      %p101 = por %p99, %p100
      %p102 = scmp.ne.s32.totalorder %s94, %s97
      %p103 = scmp.eq.s32.totalorder %s21, 0
      %p104 = por %p102, %p103
      %p105 = scmp.ne.s32.totalorder %s94, %s97
      %p106 = scmp.eq.s32.totalorder %s26, 3
      %p107 = por %p105, %p106
      %p108 = scmp.ne.s32.totalorder %s97, %s98
      %p109 = scmp.eq.s32.totalorder %s26, 0
      %p110 = por %p108, %p109
      %p111 = scmp.ne.s32.totalorder %s97, %s98
      %p112 = scmp.eq.s32.totalorder %s27, 3
      %p113 = por %p111, %p112
      %p115 = scmp.ne.s32.totalorder %s98, %s114
      %p116 = scmp.eq.s32.totalorder %s27, 0
      %p117 = por %p115, %p116
      %s118 = ssub.s32 %s28, %s40
      %s119 = ssub.s32 %s29, %s36
      %s120 = sor.u32 %s118, %s119
      %p121 = scmp.eq.s32.totalorder %s120, 0
      %s123 = sadd.s32 %s122, 1
      %s124 = scalar_select %p121, %s122, %s123
      %p127 = pneg %p121
      %p128 = scmp.eq.s32.totalorder %s21, 3
      %p129 = por %p127, %p128
      %p130 = scmp.ne.s32.totalorder %s122, %s125
      %p131 = scmp.eq.s32.totalorder %s21, 0
      %p132 = por %p130, %p131
      %p133 = scmp.ne.s32.totalorder %s122, %s125
      %p134 = scmp.eq.s32.totalorder %s26, 3
      %p135 = por %p133, %p134
      %p136 = scmp.ne.s32.totalorder %s125, %s126
      %p137 = scmp.eq.s32.totalorder %s26, 0
      %p138 = por %p136, %p137
      %p139 = scmp.ne.s32.totalorder %s125, %s126
      %p140 = scmp.eq.s32.totalorder %s27, 3
      %p141 = por %p139, %p140
      %p143 = scmp.ne.s32.totalorder %s126, %s142
      %p144 = scmp.eq.s32.totalorder %s27, 0
      %p145 = por %p143, %p144
      %s146 = ssub.s32 %s28, %s40
      %s147 = ssub.s32 %s29, %s36
      %s148 = sor.u32 %s146, %s147
      %p149 = scmp.eq.s32.totalorder %s148, 0
      %s151 = sadd.s32 %s150, 1
      %s152 = scalar_select %p149, %s150, %s151
      %p155 = pneg %p149
      %p156 = scmp.eq.s32.totalorder %s21, 3
      %p157 = por %p155, %p156
      %p158 = scmp.ne.s32.totalorder %s150, %s153
      %p159 = scmp.eq.s32.totalorder %s21, 0
      %p160 = por %p158, %p159
      %p161 = scmp.ne.s32.totalorder %s150, %s153
      %p162 = scmp.eq.s32.totalorder %s26, 3
      %p163 = por %p161, %p162
      %p164 = scmp.ne.s32.totalorder %s153, %s154
      %p165 = scmp.eq.s32.totalorder %s26, 0
      %p166 = por %p164, %p165
      %p167 = scmp.ne.s32.totalorder %s153, %s154
      %p168 = scmp.eq.s32.totalorder %s27, 3
      %p169 = por %p167, %p168
      %p171 = scmp.ne.s32.totalorder %s154, %s170
      %p172 = scmp.eq.s32.totalorder %s27, 0
      %p173 = por %p171, %p172
      %s174 = ssub.s32 %s28, %s40
      %s175 = ssub.s32 %s29, %s36
      %s176 = sor.u32 %s174, %s175
      %p177 = scmp.eq.s32.totalorder %s176, 0
      %s179 = sadd.s32 %s178, 1
      %s180 = scalar_select %p177, %s178, %s179
      %p183 = pneg %p177
      %p184 = scmp.eq.s32.totalorder %s21, 3
      %p185 = por %p183, %p184
      %p186 = scmp.ne.s32.totalorder %s178, %s181
      %p187 = scmp.eq.s32.totalorder %s21, 0
      %p188 = por %p186, %p187
      %p189 = scmp.ne.s32.totalorder %s178, %s181
      %p190 = scmp.eq.s32.totalorder %s26, 3
      %p191 = por %p189, %p190
      %p192 = scmp.ne.s32.totalorder %s181, %s182
      %p193 = scmp.eq.s32.totalorder %s26, 0
      %p194 = por %p192, %p193
      %p195 = scmp.ne.s32.totalorder %s181, %s182
      %p196 = scmp.eq.s32.totalorder %s27, 3
      %p197 = por %p195, %p196
      %p199 = scmp.ne.s32.totalorder %s182, %s198
      %p200 = scmp.eq.s32.totalorder %s27, 0
      %p201 = por %p199, %p200
      %s202 = ssub.s32 %s28, %s40
      %s203 = ssub.s32 %s29, %s36
      %s204 = sor.u32 %s202, %s203
      %p205 = scmp.eq.s32.totalorder %s204, 0
      %s207 = sadd.s32 %s206, 1
      %s208 = scalar_select %p205, %s206, %s207
      %p211 = pneg %p205
      %p212 = scmp.eq.s32.totalorder %s21, 3
      %p213 = por %p211, %p212
      %p214 = scmp.ne.s32.totalorder %s206, %s209
      %p215 = scmp.eq.s32.totalorder %s21, 0
      %p216 = por %p214, %p215
      %p217 = scmp.ne.s32.totalorder %s206, %s209
      %p218 = scmp.eq.s32.totalorder %s26, 3
      %p219 = por %p217, %p218
      %p220 = scmp.ne.s32.totalorder %s209, %s210
      %p221 = scmp.eq.s32.totalorder %s26, 0
      %p222 = por %p220, %p221
      %p223 = scmp.ne.s32.totalorder %s209, %s210
      %p224 = scmp.eq.s32.totalorder %s27, 3
      %p225 = por %p223, %p224
      %p227 = scmp.ne.s32.totalorder %s210, %s226
      %p228 = scmp.eq.s32.totalorder %s27, 0
      %p229 = por %p227, %p228
      %s230 = ssub.s32 %s28, %s40
      %s231 = ssub.s32 %s29, %s36
      %s232 = sor.u32 %s230, %s231
      %p233 = scmp.eq.s32.totalorder %s232, 0
      %s235 = sadd.s32 %s234, 1
      %s236 = scalar_select %p233, %s234, %s235
      %p239 = pneg %p233
      %p240 = scmp.eq.s32.totalorder %s21, 3
      %p241 = por %p239, %p240
      %p242 = scmp.ne.s32.totalorder %s234, %s237
      %p243 = scmp.eq.s32.totalorder %s21, 0
      %p244 = por %p242, %p243
      %p245 = scmp.ne.s32.totalorder %s234, %s237
      %p246 = scmp.eq.s32.totalorder %s26, 3
      %p247 = por %p245, %p246
      %p248 = scmp.ne.s32.totalorder %s237, %s238
      %p249 = scmp.eq.s32.totalorder %s26, 0
      %p250 = por %p248, %p249
      %p251 = scmp.ne.s32.totalorder %s237, %s238
      %p252 = scmp.eq.s32.totalorder %s27, 3
      %p253 = por %p251, %p252
      %p255 = scmp.ne.s32.totalorder %s238, %s254
      %p256 = scmp.eq.s32.totalorder %s27, 0
      %p257 = por %p255, %p256
      %s258 = ssub.s32 %s28, %s40
      %s259 = ssub.s32 %s29, %s36
      %s260 = sor.u32 %s258, %s259
      %p261 = scmp.eq.s32.totalorder %s260, 0
      %s263 = sadd.s32 %s262, 1
      %s264 = scalar_select %p261, %s262, %s263
      %p267 = pneg %p261
      %p268 = scmp.eq.s32.totalorder %s21, 3
      %p269 = por %p267, %p268
      %p270 = scmp.ne.s32.totalorder %s262, %s265
      %p271 = scmp.eq.s32.totalorder %s21, 0
      %p272 = por %p270, %p271
      %p273 = scmp.ne.s32.totalorder %s262, %s265
      %p274 = scmp.eq.s32.totalorder %s26, 3
      %p275 = por %p273, %p274
      %p276 = scmp.ne.s32.totalorder %s265, %s266
      %p277 = scmp.eq.s32.totalorder %s26, 0
      %p278 = por %p276, %p277
      %p279 = scmp.ne.s32.totalorder %s265, %s266
      %p280 = scmp.eq.s32.totalorder %s27, 3
      %p281 = por %p279, %p280
      %p283 = scmp.ne.s32.totalorder %s266, %s282
      %p284 = scmp.eq.s32.totalorder %s27, 0
      %p285 = por %p283, %p284
      %p286 = scmp.le.s32.totalorder 1, %s21
      %p287 = scmp.lt.s32.totalorder %s21, 5
      %p288 = pnand %p286, %p287
      %p289 = pneg %p288
      // Predicated region
      $region9: #{tpu_custom_call.1} parent=5 // pred_check
        _
      $region10: #{tpu_custom_call.1} parent=5 // pred_check_branch
        %291 = sbr.rel (%p288) target = $region12
      $region11: #{tpu_custom_call.1} parent=5 // pred_region
        %s292 = ssub.s32 %s21, 1
        // Predicated region
        $region13: #{tpu_custom_call.1} parent=11 // pred_check
          %p293 = pneg %p54
        $region14: #{tpu_custom_call.1} parent=11 // pred_check_branch
          %295 = sbr.rel (%p293) target = $region16
        $region15: #{tpu_custom_call.1} parent=11 // pred_region
          %s297 = ssub.s32 128, 128
          %298 = vsyncadd [#allocation4], %s297
          %s300 = sshll.u32 [#allocation3], 4
          %s301 = int_to_ptr.vmem [resolvable:$true] %s300
          %303 = dma.hbm_to_vmem [thread:$0]  %s0, 128, %s301, [#allocation4]
        $region16: #{tpu_custom_call.1} parent=11 // pred_fallthru
          _
      $region12: #{tpu_custom_call.1} parent=5 // pred_fallthru
        _
      %p304 = scmp.lt.s32.totalorder %s21, 4
      // Predicated region
      $region17: #{tpu_custom_call.1} parent=5 // pred_check
        %p305 = pneg %p304
      $region18: #{tpu_custom_call.1} parent=5 // pred_check_branch
        %307 = sbr.rel (%p305) target = $region20
      $region19: #{tpu_custom_call.1} parent=5 // pred_region
        // Predicated region
        $region21: #{tpu_custom_call.1} parent=19 // pred_check
          %p308 = pneg %p76
        $region22: #{tpu_custom_call.1} parent=19 // pred_check_branch
          %310 = sbr.rel (%p308) target = $region24
        $region23: #{tpu_custom_call.1} parent=19 // pred_region
          %s311 = sand.u32 %s66, 1
          %s312 = scalar_lea.sflag [#allocation7], %s311
          %s313 = sand.u32 %s66, 1
          %s314 = scalar_lea.vmem [#allocation6], %s313
          %s316 = ssub.s32 16, 16
          %317 = vsyncadd %s312, %s316
          %s318 = smul.addr %s28, 4
          %s319 = sadd.s32 %s29, %s318
          %s320 = smul.addr %s319, 16
          %s321 = scalar_lea.hbm %s1, %s320
          %s323 = sshll.u32 %s314, 4
          %s324 = int_to_ptr.vmem [resolvable:$true] %s323
          %326 = dma.hbm_to_vmem [thread:$0]  %s321, 16, %s324, %s312
        $region24: #{tpu_custom_call.1} parent=19 // pred_fallthru
          _
        // Predicated region
        $region25: #{tpu_custom_call.1} parent=19 // pred_check
          %p327 = pneg %p104
        $region26: #{tpu_custom_call.1} parent=19 // pred_check_branch
          %329 = sbr.rel (%p327) target = $region28
        $region27: #{tpu_custom_call.1} parent=19 // pred_region
          %p330 = scmp.lt.s32.totalorder %s28, 0
          %s331 = scalar_select %p330, %s28, 0
          %p332 = scmp.lt.s32.totalorder %s29, 3
          %s333 = scalar_select %p332, %s29, 3
          %s334 = smul.addr %s331, 4
          %s335 = sadd.s32 %s333, %s334
          %s336 = scalar_lea.vmem %s2, %s335
        $region28: #{tpu_custom_call.1} parent=19 // pred_fallthru
          _
        // Predicated region
        $region29: #{tpu_custom_call.1} parent=19 // pred_check
          %p337 = pneg %p132
        $region30: #{tpu_custom_call.1} parent=19 // pred_check_branch
          %339 = sbr.rel (%p337) target = $region32
        $region31: #{tpu_custom_call.1} parent=19 // pred_region
          %p340 = scmp.lt.s32.totalorder %s28, 0
          %s341 = scalar_select %p340, %s28, 0
          %p342 = scmp.lt.s32.totalorder %s29, 3
          %s343 = scalar_select %p342, %s29, 3
          %s344 = smul.addr %s341, 4
          %s345 = sadd.s32 %s343, %s344
          %s346 = scalar_lea.vmem %s3, %s345
        $region32: #{tpu_custom_call.1} parent=19 // pred_fallthru
          _
        // Predicated region
        $region33: #{tpu_custom_call.1} parent=19 // pred_check
          %p347 = pneg %p160
        $region34: #{tpu_custom_call.1} parent=19 // pred_check_branch
          %349 = sbr.rel (%p347) target = $region36
        $region35: #{tpu_custom_call.1} parent=19 // pred_region
          %p350 = scmp.lt.s32.totalorder %s28, 0
          %s351 = scalar_select %p350, %s28, 0
          %p352 = scmp.lt.s32.totalorder %s29, 3
          %s353 = scalar_select %p352, %s29, 3
          %s354 = smul.addr %s351, 4
          %s355 = sadd.s32 %s353, %s354
          %s356 = scalar_lea.vmem %s4, %s355
        $region36: #{tpu_custom_call.1} parent=19 // pred_fallthru
          _
        // Predicated region
        $region37: #{tpu_custom_call.1} parent=19 // pred_check
          %p357 = pneg %p188
        $region38: #{tpu_custom_call.1} parent=19 // pred_check_branch
          %359 = sbr.rel (%p357) target = $region40
        $region39: #{tpu_custom_call.1} parent=19 // pred_region
          %p360 = scmp.lt.s32.totalorder %s28, 0
          %s361 = scalar_select %p360, %s28, 0
          %p362 = scmp.lt.s32.totalorder %s29, 3
          %s363 = scalar_select %p362, %s29, 3
          %s364 = smul.addr %s361, 4
          %s365 = sadd.s32 %s363, %s364
          %s366 = scalar_lea.vmem %s5, %s365
        $region40: #{tpu_custom_call.1} parent=19 // pred_fallthru
          _
        // Predicated region
        $region41: #{tpu_custom_call.1} parent=19 // pred_check
          %p367 = pneg %p216
        $region42: #{tpu_custom_call.1} parent=19 // pred_check_branch
          %369 = sbr.rel (%p367) target = $region44
        $region43: #{tpu_custom_call.1} parent=19 // pred_region
          %p370 = scmp.lt.s32.totalorder %s28, 0
          %s371 = scalar_select %p370, %s28, 0
          %p372 = scmp.lt.s32.totalorder %s29, 3
          %s373 = scalar_select %p372, %s29, 3
          %s374 = smul.addr %s371, 4
          %s375 = sadd.s32 %s373, %s374
          %s376 = scalar_lea.vmem %s6, %s375
        $region44: #{tpu_custom_call.1} parent=19 // pred_fallthru
          _
        // Predicated region
        $region45: #{tpu_custom_call.1} parent=19 // pred_check
          %p377 = pneg %p244
        $region46: #{tpu_custom_call.1} parent=19 // pred_check_branch
          %379 = sbr.rel (%p377) target = $region48
        $region47: #{tpu_custom_call.1} parent=19 // pred_region
          %p380 = scmp.lt.s32.totalorder %s28, 0
          %s381 = scalar_select %p380, %s28, 0
          %p382 = scmp.lt.s32.totalorder %s29, 3
          %s383 = scalar_select %p382, %s29, 3
          %s384 = smul.addr %s381, 4
          %s385 = sadd.s32 %s383, %s384
          %s386 = scalar_lea.vmem %s7, %s385
        $region48: #{tpu_custom_call.1} parent=19 // pred_fallthru
          _
      $region20: #{tpu_custom_call.1} parent=5 // pred_fallthru
        _
      %p387 = scmp.le.s32.totalorder 1, %s21
      %p388 = scmp.lt.s32.totalorder %s21, 5
      %p389 = pnand %p387, %p388
      %p390 = pneg %p389
      // Predicated region
      $region49: #{tpu_custom_call.1} parent=5 // pred_check
        _
      $region50: #{tpu_custom_call.1} parent=5 // pred_check_branch
        %392 = sbr.rel (%p389) target = $region52
      $region51: #{tpu_custom_call.1} parent=5 // pred_region
        %s393 = ssub.s32 %s21, 1
        // Predicated region
        $region53: #{tpu_custom_call.1} parent=51 // pred_check
          %p394 = pneg %p54
        $region54: #{tpu_custom_call.1} parent=51 // pred_check_branch
          %396 = sbr.rel (%p394) target = $region56
        $region55: #{tpu_custom_call.1} parent=51 // pred_region
          %397 = dma.done [#allocation4], 128
        $region56: #{tpu_custom_call.1} parent=51 // pred_fallthru
          _
        %s398 = sand.u32 %s69, 1
        %s399 = scalar_lea.sflag [#allocation7], %s398
        %s400 = sand.u32 %s69, 1
        %s401 = scalar_lea.vmem [#allocation6], %s400
        // Predicated region
        $region57: #{tpu_custom_call.1} parent=51 // pred_check
          %p402 = pneg %p82
        $region58: #{tpu_custom_call.1} parent=51 // pred_check_branch
          %404 = sbr.rel (%p402) target = $region60
        $region59: #{tpu_custom_call.1} parent=51 // pred_region
          %405 = dma.done %s399, 16
        $region60: #{tpu_custom_call.1} parent=51 // pred_fallthru
          _
        %p406 = pneg %p54
        %p407 = pneg %p51
        %s408 = sand.u32 %s69, 1
        %s409 = scalar_lea.sflag [#allocation7], %s408
        %s410 = sand.u32 %s69, 1
        %s411 = scalar_lea.vmem [#allocation6], %s410
        %p412 = pneg %p82
        %p413 = pneg %p79
        %p414 = scmp.lt.s32.totalorder %s30, 0
        %s415 = scalar_select %p414, %s30, 0
        %p416 = scmp.lt.s32.totalorder %s31, 3
        %s417 = scalar_select %p416, %s31, 3
        %s418 = smul.addr %s415, 4
        %s419 = sadd.s32 %s417, %s418
        %s420 = scalar_lea.vmem %s2, %s419
        %p421 = pneg %p110
        %p422 = pneg %p107
        %p423 = scmp.lt.s32.totalorder %s30, 0
        %s424 = scalar_select %p423, %s30, 0
        %p425 = scmp.lt.s32.totalorder %s31, 3
        %s426 = scalar_select %p425, %s31, 3
        %s427 = smul.addr %s424, 4
        %s428 = sadd.s32 %s426, %s427
        %s429 = scalar_lea.vmem %s3, %s428
        %p430 = pneg %p138
        %p431 = pneg %p135
        %p432 = scmp.lt.s32.totalorder %s30, 0
        %s433 = scalar_select %p432, %s30, 0
        %p434 = scmp.lt.s32.totalorder %s31, 3
        %s435 = scalar_select %p434, %s31, 3
        %s436 = smul.addr %s433, 4
        %s437 = sadd.s32 %s435, %s436
        %s438 = scalar_lea.vmem %s4, %s437
        %p439 = pneg %p166
        %p440 = pneg %p163
        %p441 = scmp.lt.s32.totalorder %s30, 0
        %s442 = scalar_select %p441, %s30, 0
        %p443 = scmp.lt.s32.totalorder %s31, 3
        %s444 = scalar_select %p443, %s31, 3
        %s445 = smul.addr %s442, 4
        %s446 = sadd.s32 %s444, %s445
        %s447 = scalar_lea.vmem %s5, %s446
        %p448 = pneg %p194
        %p449 = pneg %p191
        %p450 = scmp.lt.s32.totalorder %s30, 0
        %s451 = scalar_select %p450, %s30, 0
        %p452 = scmp.lt.s32.totalorder %s31, 3
        %s453 = scalar_select %p452, %s31, 3
        %s454 = smul.addr %s451, 4
        %s455 = sadd.s32 %s453, %s454
        %s456 = scalar_lea.vmem %s6, %s455
        %p457 = pneg %p222
        %p458 = pneg %p219
        %p459 = scmp.lt.s32.totalorder %s30, 0
        %s460 = scalar_select %p459, %s30, 0
        %p461 = scmp.lt.s32.totalorder %s31, 3
        %s462 = scalar_select %p461, %s31, 3
        %s463 = smul.addr %s460, 4
        %s464 = sadd.s32 %s462, %s463
        %s465 = scalar_lea.vmem %s7, %s464
        %p466 = pneg %p250
        %p467 = pneg %p247
        %p468 = pneg %p278
        %p469 = pneg %p275
        %s470 = sand.u32 %s265, 1
        %s471 = scalar_lea.sflag [#allocation5], %s470
        %s472 = sand.u32 %s265, 1
        %s473 = smul.addr %s472, 8
        %s474 = scalar_lea.vmem [#allocation8], %s473
        %p475 = scmp.lt.s32.totalorder %s30, 0
        %s476 = scalar_select %p475, %s30, 0
        %p477 = scmp.lt.s32.totalorder %s31, 3
        %s478 = scalar_select %p477, %s31, 3
        %s479 = smul.addr %s476, 4
        %s480 = sadd.s32 %s478, %s479
        %s481 = scalar_lea.vmem %s2, %s480
        %p482 = scmp.lt.s32.totalorder %s30, 0
        %s483 = scalar_select %p482, %s30, 0
        %p484 = scmp.lt.s32.totalorder %s31, 3
        %s485 = scalar_select %p484, %s31, 3
        %s486 = smul.addr %s483, 4
        %s487 = sadd.s32 %s485, %s486
        %s488 = scalar_lea.vmem %s3, %s487
        %p489 = scmp.lt.s32.totalorder %s30, 0
        %s490 = scalar_select %p489, %s30, 0
        %p491 = scmp.lt.s32.totalorder %s31, 3
        %s492 = scalar_select %p491, %s31, 3
        %s493 = smul.addr %s490, 4
        %s494 = sadd.s32 %s492, %s493
        %s495 = scalar_lea.vmem %s4, %s494
        %p496 = scmp.lt.s32.totalorder %s30, 0
        %s497 = scalar_select %p496, %s30, 0
        %p498 = scmp.lt.s32.totalorder %s31, 3
        %s499 = scalar_select %p498, %s31, 3
        %s500 = smul.addr %s497, 4
        %s501 = sadd.s32 %s499, %s500
        %s502 = scalar_lea.vmem %s5, %s501
        %p503 = scmp.lt.s32.totalorder %s30, 0
        %s504 = scalar_select %p503, %s30, 0
        %p505 = scmp.lt.s32.totalorder %s31, 3
        %s506 = scalar_select %p505, %s31, 3
        %s507 = smul.addr %s504, 4
        %s508 = sadd.s32 %s506, %s507
        %s509 = scalar_lea.vmem %s6, %s508
        %p510 = scmp.lt.s32.totalorder %s30, 0
        %s511 = scalar_select %p510, %s30, 0
        %p512 = scmp.lt.s32.totalorder %s31, 3
        %s513 = scalar_select %p512, %s31, 3
        %s514 = smul.addr %s511, 4
        %s515 = sadd.s32 %s513, %s514
        %s516 = scalar_lea.vmem %s7, %s515
        %v517 = vld [vmem:[%s401] sm:$0x1]
        %518 = vst [vmem:[#allocation2] sm:$0x1] %v517
        %v519 = vld [vmem:[%s481] sm:$0x1]
        %520 = vst [vmem:[#allocation2 + $0x1] sm:$0x1] %v519
        %v521 = vld [vmem:[%s488] sm:$0x1]
        %522 = vst [vmem:[#allocation2 + $0x2] sm:$0x1] %v521
        %v523 = vld [vmem:[%s495] sm:$0x1]
        %524 = vst [vmem:[#allocation2 + $0x3] sm:$0x1] %v523
        %v525 = vld [vmem:[%s502] sm:$0x1]
        %526 = vst [vmem:[#allocation2 + $0x4] sm:$0x1] %v525
        %v527 = vld [vmem:[%s509] sm:$0x1]
        %528 = vst [vmem:[#allocation2 + $0x5] sm:$0x1] %v527
        %v529 = vld [vmem:[%s516] sm:$0x1]
        %530 = vst [vmem:[#allocation2 + $0x6] sm:$0x1] %v529
        %531 = vst [vmem:[#allocation2 + $0x7] sm:$0x1] 1.0
        %v532 = vld [vmem:[#allocation3] sm:$0xff]
        %v533 = vld [vmem:[#allocation2] sm:$0xff]
        %vm534 = vcmask 64512
        %v536 = vsel %vm534, %v532, 0
        %538 = vmatprep.subr.mxu0 0.0
        %v539 = vand.u32 %v533, 4294901760
        %540 = vmatpush1.msra.mxu0 %v539
        %541 = vmatprep.subr.mxu0 0.0
        %542 = vmatpush1.msra.mxu0 0.0
        %543 = vmatprep.subr.mxu0 0.0
        %544 = vmatpush1.msra.mxu0 0.0
        %545 = vmatprep.subr.mxu0 0.0
        %546 = vmatpush1.msra.mxu0 0.0
        %547 = vmatprep.subr.mxu0 0.0
        %548 = vmatpush1.msra.mxu0 0.0
        %549 = vmatprep.subr.mxu0 0.0
        %550 = vmatpush1.msra.mxu0 0.0
        %551 = vmatprep.subr.mxu0 0.0
        %552 = vmatpush1.msra.mxu0 0.0
        %553 = vmatprep.subr.mxu0 0.0
        %554 = vmatpush1.msra.mxu0 0.0
        %555 = vmatprep.subr.mxu0 0.0
        %556 = vmatpush1.msra.mxu0 0.0
        %557 = vmatprep.subr.mxu0 0.0
        %558 = vmatpush1.msra.mxu0 0.0
        %559 = vmatprep.subr.mxu0 0.0
        %560 = vmatpush1.msra.mxu0 0.0
        %561 = vmatprep.subr.mxu0 0.0
        %562 = vmatpush1.msra.mxu0 0.0
        %563 = vmatprep.subr.mxu0 0.0
        %564 = vmatpush1.msra.mxu0 0.0
        %565 = vmatprep.subr.mxu0 0.0
        %566 = vmatpush1.msra.mxu0 0.0
        %567 = vmatprep.subr.mxu0 0.0
        %568 = vmatpush1.msra.mxu0 0.0
        %569 = vmatprep.subr.mxu0 0.0
        %570 = vmatpush1.msra.mxu0 0.0
        %571 = vmatprep.subr.mxu0 0.0
        %572 = vmatpush1.msra.mxu0 0.0
        %573 = vmatprep.subr.mxu0 0.0
        %574 = vmatpush1.msra.mxu0 0.0
        %575 = vmatprep.subr.mxu0 0.0
        %576 = vmatpush1.msra.mxu0 0.0
        %577 = vmatprep.subr.mxu0 0.0
        %578 = vmatpush1.msra.mxu0 0.0
        %579 = vmatprep.subr.mxu0 0.0
        %580 = vmatpush1.msra.mxu0 0.0
        %581 = vmatprep.subr.mxu0 0.0
        %582 = vmatpush1.msra.mxu0 0.0
        %583 = vmatprep.subr.mxu0 0.0
        %584 = vmatpush1.msra.mxu0 0.0
        %585 = vmatprep.subr.mxu0 0.0
        %586 = vmatpush1.msra.mxu0 0.0
        %587 = vmatprep.subr.mxu0 0.0
        %588 = vmatpush1.msra.mxu0 0.0
        %589 = vmatprep.subr.mxu0 0.0
        %590 = vmatpush1.msra.mxu0 0.0
        %591 = vmatprep.subr.mxu0 0.0
        %592 = vmatpush1.msra.mxu0 0.0
        %593 = vmatprep.subr.mxu0 0.0
        %594 = vmatpush1.msra.mxu0 0.0
        %595 = vmatprep.subr.mxu0 0.0
        %596 = vmatpush1.msra.mxu0 0.0
        %597 = vmatprep.subr.mxu0 0.0
        %598 = vmatpush1.msra.mxu0 0.0
        %599 = vmatprep.subr.mxu0 0.0
        %600 = vmatpush1.msra.mxu0 0.0
        %601 = vmatprep.subr.mxu0 0.0
        %602 = vmatpush1.msra.mxu0 0.0
        %603 = vmatprep.mubr.f32.mxu0 0.0
        %v604 = vand.u32 %v536, 4294901760
        %v605 = vsub.f32 %v536, %v604
        %v606 = vand.u32 %v605, 4294901760
        %v607 = vsub.f32 %v605, %v606
        %v608 = vand.u32 %v607, 4294901760
        %609 = vmatmul.mubr.f32.gmra.mrb[0].mxu0 %v608
        %v610 = vpop.f32.mrb[0].mxu0
        %v611 = vadd.f32 0.0, %v610
        %v612 = vpop.f32.mrb[0].mxu0
        %613 = vdwg.mxu0
        %614 = vmatprep.subr.mxu0 0.0
        %v615 = vand.u32 %v533, 4294901760
        %v616 = vsub.f32 %v533, %v615
        %v617 = vand.u32 %v616, 4294901760
        %v618 = vsub.f32 %v616, %v617
        %v619 = vand.u32 %v618, 4294901760
        %620 = vmatpush1.msra.mxu0 %v619
        %621 = vmatprep.subr.mxu0 0.0
        %622 = vmatpush1.msra.mxu0 0.0
        %623 = vmatprep.subr.mxu0 0.0
        %624 = vmatpush1.msra.mxu0 0.0
        %625 = vmatprep.subr.mxu0 0.0
        %626 = vmatpush1.msra.mxu0 0.0
        %627 = vmatprep.subr.mxu0 0.0
        %628 = vmatpush1.msra.mxu0 0.0
        %629 = vmatprep.subr.mxu0 0.0
        %630 = vmatpush1.msra.mxu0 0.0
        %631 = vmatprep.subr.mxu0 0.0
        %632 = vmatpush1.msra.mxu0 0.0
        %633 = vmatprep.subr.mxu0 0.0
        %634 = vmatpush1.msra.mxu0 0.0
        %635 = vmatprep.subr.mxu0 0.0
        %636 = vmatpush1.msra.mxu0 0.0
        %637 = vmatprep.subr.mxu0 0.0
        %638 = vmatpush1.msra.mxu0 0.0
        %639 = vmatprep.subr.mxu0 0.0
        %640 = vmatpush1.msra.mxu0 0.0
        %641 = vmatprep.subr.mxu0 0.0
        %642 = vmatpush1.msra.mxu0 0.0
        %643 = vmatprep.subr.mxu0 0.0
        %644 = vmatpush1.msra.mxu0 0.0
        %645 = vmatprep.subr.mxu0 0.0
        %646 = vmatpush1.msra.mxu0 0.0
        %647 = vmatprep.subr.mxu0 0.0
        %648 = vmatpush1.msra.mxu0 0.0
        %649 = vmatprep.subr.mxu0 0.0
        %650 = vmatpush1.msra.mxu0 0.0
        %651 = vmatprep.subr.mxu0 0.0
        %652 = vmatpush1.msra.mxu0 0.0
        %653 = vmatprep.subr.mxu0 0.0
        %654 = vmatpush1.msra.mxu0 0.0
        %655 = vmatprep.subr.mxu0 0.0
        %656 = vmatpush1.msra.mxu0 0.0
        %657 = vmatprep.subr.mxu0 0.0
        %658 = vmatpush1.msra.mxu0 0.0
        %659 = vmatprep.subr.mxu0 0.0
        %660 = vmatpush1.msra.mxu0 0.0
        %661 = vmatprep.subr.mxu0 0.0
        %662 = vmatpush1.msra.mxu0 0.0
        %663 = vmatprep.subr.mxu0 0.0
        %664 = vmatpush1.msra.mxu0 0.0
        %665 = vmatprep.subr.mxu0 0.0
        %666 = vmatpush1.msra.mxu0 0.0
        %667 = vmatprep.subr.mxu0 0.0
        %668 = vmatpush1.msra.mxu0 0.0
        %669 = vmatprep.subr.mxu0 0.0
        %670 = vmatpush1.msra.mxu0 0.0
        %671 = vmatprep.subr.mxu0 0.0
        %672 = vmatpush1.msra.mxu0 0.0
        %673 = vmatprep.subr.mxu0 0.0
        %674 = vmatpush1.msra.mxu0 0.0
        %675 = vmatprep.subr.mxu0 0.0
        %676 = vmatpush1.msra.mxu0 0.0
        %677 = vmatprep.subr.mxu0 0.0
        %678 = vmatpush1.msra.mxu0 0.0
        %679 = vmatprep.subr.mxu0 0.0
        %680 = vmatpush1.msra.mxu0 0.0
        %681 = vmatprep.subr.mxu0 0.0
        %682 = vmatpush1.msra.mxu0 0.0
        %683 = vmatprep.mubr.f32.mxu0 0.0
        %v684 = vand.u32 %v536, 4294901760
        %685 = vmatmul.mubr.f32.gmra.mrb[0].mxu0 %v684
        %v686 = vpop.f32.mrb[0].mxu0
        %v687 = vadd.f32 %v611, %v686
        %v688 = vpop.f32.mrb[0].mxu0
        %689 = vdwg.mxu0
        %690 = vmatprep.subr.mxu0 0.0
        %v691 = vand.u32 %v533, 4294901760
        %v692 = vsub.f32 %v533, %v691
        %693 = vmatpush1.msra.mxu0 %v692
        %694 = vmatprep.subr.mxu0 0.0
        %695 = vmatpush1.msra.mxu0 0.0
        %696 = vmatprep.subr.mxu0 0.0
        %697 = vmatpush1.msra.mxu0 0.0
        %698 = vmatprep.subr.mxu0 0.0
        %699 = vmatpush1.msra.mxu0 0.0
        %700 = vmatprep.subr.mxu0 0.0
        %701 = vmatpush1.msra.mxu0 0.0
        %702 = vmatprep.subr.mxu0 0.0
        %703 = vmatpush1.msra.mxu0 0.0
        %704 = vmatprep.subr.mxu0 0.0
        %705 = vmatpush1.msra.mxu0 0.0
        %706 = vmatprep.subr.mxu0 0.0
        %707 = vmatpush1.msra.mxu0 0.0
        %708 = vmatprep.subr.mxu0 0.0
        %709 = vmatpush1.msra.mxu0 0.0
        %710 = vmatprep.subr.mxu0 0.0
        %711 = vmatpush1.msra.mxu0 0.0
        %712 = vmatprep.subr.mxu0 0.0
        %713 = vmatpush1.msra.mxu0 0.0
        %714 = vmatprep.subr.mxu0 0.0
        %715 = vmatpush1.msra.mxu0 0.0
        %716 = vmatprep.subr.mxu0 0.0
        %717 = vmatpush1.msra.mxu0 0.0
        %718 = vmatprep.subr.mxu0 0.0
        %719 = vmatpush1.msra.mxu0 0.0
        %720 = vmatprep.subr.mxu0 0.0
        %721 = vmatpush1.msra.mxu0 0.0
        %722 = vmatprep.subr.mxu0 0.0
        %723 = vmatpush1.msra.mxu0 0.0
        %724 = vmatprep.subr.mxu0 0.0
        %725 = vmatpush1.msra.mxu0 0.0
        %726 = vmatprep.subr.mxu0 0.0
        %727 = vmatpush1.msra.mxu0 0.0
        %728 = vmatprep.subr.mxu0 0.0
        %729 = vmatpush1.msra.mxu0 0.0
        %730 = vmatprep.subr.mxu0 0.0
        %731 = vmatpush1.msra.mxu0 0.0
        %732 = vmatprep.subr.mxu0 0.0
        %733 = vmatpush1.msra.mxu0 0.0
        %734 = vmatprep.subr.mxu0 0.0
        %735 = vmatpush1.msra.mxu0 0.0
        %736 = vmatprep.subr.mxu0 0.0
        %737 = vmatpush1.msra.mxu0 0.0
        %738 = vmatprep.subr.mxu0 0.0
        %739 = vmatpush1.msra.mxu0 0.0
        %740 = vmatprep.subr.mxu0 0.0
        %741 = vmatpush1.msra.mxu0 0.0
        %742 = vmatprep.subr.mxu0 0.0
        %743 = vmatpush1.msra.mxu0 0.0
        %744 = vmatprep.subr.mxu0 0.0
        %745 = vmatpush1.msra.mxu0 0.0
        %746 = vmatprep.subr.mxu0 0.0
        %747 = vmatpush1.msra.mxu0 0.0
        %748 = vmatprep.subr.mxu0 0.0
        %749 = vmatpush1.msra.mxu0 0.0
        %750 = vmatprep.subr.mxu0 0.0
        %751 = vmatpush1.msra.mxu0 0.0
        %752 = vmatprep.subr.mxu0 0.0
        %753 = vmatpush1.msra.mxu0 0.0
        %754 = vmatprep.subr.mxu0 0.0
        %755 = vmatpush1.msra.mxu0 0.0
        %756 = vmatprep.mubr.f32.mxu0 0.0
        %v757 = vand.u32 %v536, 4294901760
        %v758 = vsub.f32 %v536, %v757
        %759 = vmatmul.mubr.f32.gmra.mrb[0].mxu0 %v758
        %v760 = vpop.f32.mrb[0].mxu0
        %v761 = vadd.f32 %v687, %v760
        %v762 = vpop.f32.mrb[0].mxu0
        %763 = vdwg.mxu0
        %764 = vmatprep.subr.mxu0 0.0
        %v765 = vand.u32 %v533, 4294901760
        %766 = vmatpush1.msra.mxu0 %v765
        %767 = vmatprep.subr.mxu0 0.0
        %768 = vmatpush1.msra.mxu0 0.0
        %769 = vmatprep.subr.mxu0 0.0
        %770 = vmatpush1.msra.mxu0 0.0
        %771 = vmatprep.subr.mxu0 0.0
        %772 = vmatpush1.msra.mxu0 0.0
        %773 = vmatprep.subr.mxu0 0.0
        %774 = vmatpush1.msra.mxu0 0.0
        %775 = vmatprep.subr.mxu0 0.0
        %776 = vmatpush1.msra.mxu0 0.0
        %777 = vmatprep.subr.mxu0 0.0
        %778 = vmatpush1.msra.mxu0 0.0
        %779 = vmatprep.subr.mxu0 0.0
        %780 = vmatpush1.msra.mxu0 0.0
        %781 = vmatprep.subr.mxu0 0.0
        %782 = vmatpush1.msra.mxu0 0.0
        %783 = vmatprep.subr.mxu0 0.0
        %784 = vmatpush1.msra.mxu0 0.0
        %785 = vmatprep.subr.mxu0 0.0
        %786 = vmatpush1.msra.mxu0 0.0
        %787 = vmatprep.subr.mxu0 0.0
        %788 = vmatpush1.msra.mxu0 0.0
        %789 = vmatprep.subr.mxu0 0.0
        %790 = vmatpush1.msra.mxu0 0.0
        %791 = vmatprep.subr.mxu0 0.0
        %792 = vmatpush1.msra.mxu0 0.0
        %793 = vmatprep.subr.mxu0 0.0
        %794 = vmatpush1.msra.mxu0 0.0
        %795 = vmatprep.subr.mxu0 0.0
        %796 = vmatpush1.msra.mxu0 0.0
        %797 = vmatprep.subr.mxu0 0.0
        %798 = vmatpush1.msra.mxu0 0.0
        %799 = vmatprep.subr.mxu0 0.0
        %800 = vmatpush1.msra.mxu0 0.0
        %801 = vmatprep.subr.mxu0 0.0
        %802 = vmatpush1.msra.mxu0 0.0
        %803 = vmatprep.subr.mxu0 0.0
        %804 = vmatpush1.msra.mxu0 0.0
        %805 = vmatprep.subr.mxu0 0.0
        %806 = vmatpush1.msra.mxu0 0.0
        %807 = vmatprep.subr.mxu0 0.0
        %808 = vmatpush1.msra.mxu0 0.0
        %809 = vmatprep.subr.mxu0 0.0
        %810 = vmatpush1.msra.mxu0 0.0
        %811 = vmatprep.subr.mxu0 0.0
        %812 = vmatpush1.msra.mxu0 0.0
        %813 = vmatprep.subr.mxu0 0.0
        %814 = vmatpush1.msra.mxu0 0.0
        %815 = vmatprep.subr.mxu0 0.0
        %816 = vmatpush1.msra.mxu0 0.0
        %817 = vmatprep.subr.mxu0 0.0
        %818 = vmatpush1.msra.mxu0 0.0
        %819 = vmatprep.subr.mxu0 0.0
        %820 = vmatpush1.msra.mxu0 0.0
        %821 = vmatprep.subr.mxu0 0.0
        %822 = vmatpush1.msra.mxu0 0.0
        %823 = vmatprep.subr.mxu0 0.0
        %824 = vmatpush1.msra.mxu0 0.0
        %825 = vmatprep.subr.mxu0 0.0
        %826 = vmatpush1.msra.mxu0 0.0
        %827 = vmatprep.subr.mxu0 0.0
        %828 = vmatpush1.msra.mxu0 0.0
        %829 = vmatprep.mubr.f32.mxu0 0.0
        %v830 = vand.u32 %v536, 4294901760
        %v831 = vsub.f32 %v536, %v830
        %v832 = vand.u32 %v831, 4294901760
        %833 = vmatmul.mubr.f32.gmra.mrb[0].mxu0 %v832
        %v834 = vpop.f32.mrb[0].mxu0
        %v835 = vadd.f32 %v761, %v834
        %v836 = vpop.f32.mrb[0].mxu0
        %837 = vdwg.mxu0
        %838 = vmatprep.subr.mxu0 0.0
        %v839 = vand.u32 %v533, 4294901760
        %v840 = vsub.f32 %v533, %v839
        %v841 = vand.u32 %v840, 4294901760
        %842 = vmatpush1.msra.mxu0 %v841
        %843 = vmatprep.subr.mxu0 0.0
        %844 = vmatpush1.msra.mxu0 0.0
        %845 = vmatprep.subr.mxu0 0.0
        %846 = vmatpush1.msra.mxu0 0.0
        %847 = vmatprep.subr.mxu0 0.0
        %848 = vmatpush1.msra.mxu0 0.0
        %849 = vmatprep.subr.mxu0 0.0
        %850 = vmatpush1.msra.mxu0 0.0
        %851 = vmatprep.subr.mxu0 0.0
        %852 = vmatpush1.msra.mxu0 0.0
        %853 = vmatprep.subr.mxu0 0.0
        %854 = vmatpush1.msra.mxu0 0.0
        %855 = vmatprep.subr.mxu0 0.0
        %856 = vmatpush1.msra.mxu0 0.0
        %857 = vmatprep.subr.mxu0 0.0
        %858 = vmatpush1.msra.mxu0 0.0
        %859 = vmatprep.subr.mxu0 0.0
        %860 = vmatpush1.msra.mxu0 0.0
        %861 = vmatprep.subr.mxu0 0.0
        %862 = vmatpush1.msra.mxu0 0.0
        %863 = vmatprep.subr.mxu0 0.0
        %864 = vmatpush1.msra.mxu0 0.0
        %865 = vmatprep.subr.mxu0 0.0
        %866 = vmatpush1.msra.mxu0 0.0
        %867 = vmatprep.subr.mxu0 0.0
        %868 = vmatpush1.msra.mxu0 0.0
        %869 = vmatprep.subr.mxu0 0.0
        %870 = vmatpush1.msra.mxu0 0.0
        %871 = vmatprep.subr.mxu0 0.0
        %872 = vmatpush1.msra.mxu0 0.0
        %873 = vmatprep.subr.mxu0 0.0
        %874 = vmatpush1.msra.mxu0 0.0
        %875 = vmatprep.subr.mxu0 0.0
        %876 = vmatpush1.msra.mxu0 0.0
        %877 = vmatprep.subr.mxu0 0.0
        %878 = vmatpush1.msra.mxu0 0.0
        %879 = vmatprep.subr.mxu0 0.0
        %880 = vmatpush1.msra.mxu0 0.0
        %881 = vmatprep.subr.mxu0 0.0
        %882 = vmatpush1.msra.mxu0 0.0
        %883 = vmatprep.subr.mxu0 0.0
        %884 = vmatpush1.msra.mxu0 0.0
        %885 = vmatprep.subr.mxu0 0.0
        %886 = vmatpush1.msra.mxu0 0.0
        %887 = vmatprep.subr.mxu0 0.0
        %888 = vmatpush1.msra.mxu0 0.0
        %889 = vmatprep.subr.mxu0 0.0
        %890 = vmatpush1.msra.mxu0 0.0
        %891 = vmatprep.subr.mxu0 0.0
        %892 = vmatpush1.msra.mxu0 0.0
        %893 = vmatprep.subr.mxu0 0.0
        %894 = vmatpush1.msra.mxu0 0.0
        %895 = vmatprep.subr.mxu0 0.0
        %896 = vmatpush1.msra.mxu0 0.0
        %897 = vmatprep.subr.mxu0 0.0
        %898 = vmatpush1.msra.mxu0 0.0
        %899 = vmatprep.subr.mxu0 0.0
        %900 = vmatpush1.msra.mxu0 0.0
        %901 = vmatprep.subr.mxu0 0.0
        %902 = vmatpush1.msra.mxu0 0.0
        %903 = vmatprep.subr.mxu0 0.0
        %904 = vmatpush1.msra.mxu0 0.0
        %905 = vmatprep.mubr.f32.mxu0 0.0
        %v906 = vand.u32 %v536, 4294901760
        %907 = vmatmul.mubr.f32.gmra.mrb[0].mxu0 %v906
        %v908 = vpop.f32.mrb[0].mxu0
        %v909 = vadd.f32 %v835, %v908
        %v910 = vpop.f32.mrb[0].mxu0
        %911 = vdwg.mxu0
        %912 = vmatprep.subr.mxu0 0.0
        %v913 = vand.u32 %v533, 4294901760
        %914 = vmatpush1.msra.mxu0 %v913
        %915 = vmatprep.subr.mxu0 0.0
        %916 = vmatpush1.msra.mxu0 0.0
        %917 = vmatprep.subr.mxu0 0.0
        %918 = vmatpush1.msra.mxu0 0.0
        %919 = vmatprep.subr.mxu0 0.0
        %920 = vmatpush1.msra.mxu0 0.0
        %921 = vmatprep.subr.mxu0 0.0
        %922 = vmatpush1.msra.mxu0 0.0
        %923 = vmatprep.subr.mxu0 0.0
        %924 = vmatpush1.msra.mxu0 0.0
        %925 = vmatprep.subr.mxu0 0.0
        %926 = vmatpush1.msra.mxu0 0.0
        %927 = vmatprep.subr.mxu0 0.0
        %928 = vmatpush1.msra.mxu0 0.0
        %929 = vmatprep.subr.mxu0 0.0
        %930 = vmatpush1.msra.mxu0 0.0
        %931 = vmatprep.subr.mxu0 0.0
        %932 = vmatpush1.msra.mxu0 0.0
        %933 = vmatprep.subr.mxu0 0.0
        %934 = vmatpush1.msra.mxu0 0.0
        %935 = vmatprep.subr.mxu0 0.0
        %936 = vmatpush1.msra.mxu0 0.0
        %937 = vmatprep.subr.mxu0 0.0
        %938 = vmatpush1.msra.mxu0 0.0
        %939 = vmatprep.subr.mxu0 0.0
        %940 = vmatpush1.msra.mxu0 0.0
        %941 = vmatprep.subr.mxu0 0.0
        %942 = vmatpush1.msra.mxu0 0.0
        %943 = vmatprep.subr.mxu0 0.0
        %944 = vmatpush1.msra.mxu0 0.0
        %945 = vmatprep.subr.mxu0 0.0
        %946 = vmatpush1.msra.mxu0 0.0
        %947 = vmatprep.subr.mxu0 0.0
        %948 = vmatpush1.msra.mxu0 0.0
        %949 = vmatprep.subr.mxu0 0.0
        %950 = vmatpush1.msra.mxu0 0.0
        %951 = vmatprep.subr.mxu0 0.0
        %952 = vmatpush1.msra.mxu0 0.0
        %953 = vmatprep.subr.mxu0 0.0
        %954 = vmatpush1.msra.mxu0 0.0
        %955 = vmatprep.subr.mxu0 0.0
        %956 = vmatpush1.msra.mxu0 0.0
        %957 = vmatprep.subr.mxu0 0.0
        %958 = vmatpush1.msra.mxu0 0.0
        %959 = vmatprep.subr.mxu0 0.0
        %960 = vmatpush1.msra.mxu0 0.0
        %961 = vmatprep.subr.mxu0 0.0
        %962 = vmatpush1.msra.mxu0 0.0
        %963 = vmatprep.subr.mxu0 0.0
        %964 = vmatpush1.msra.mxu0 0.0
        %965 = vmatprep.subr.mxu0 0.0
        %966 = vmatpush1.msra.mxu0 0.0
        %967 = vmatprep.subr.mxu0 0.0
        %968 = vmatpush1.msra.mxu0 0.0
        %969 = vmatprep.subr.mxu0 0.0
        %970 = vmatpush1.msra.mxu0 0.0
        %971 = vmatprep.subr.mxu0 0.0
        %972 = vmatpush1.msra.mxu0 0.0
        %973 = vmatprep.subr.mxu0 0.0
        %974 = vmatpush1.msra.mxu0 0.0
        %975 = vmatprep.subr.mxu0 0.0
        %976 = vmatpush1.msra.mxu0 0.0
        %977 = vmatprep.mubr.f32.mxu0 0.0
        %v978 = vand.u32 %v536, 4294901760
        %979 = vmatmul.mubr.f32.gmra.mrb[0].mxu0 %v978
        %v980 = vpop.f32.mrb[0].mxu0
        %v981 = vadd.f32 %v909, %v980
        %v982 = vpop.f32.mrb[0].mxu0
        %983 = vdwg.mxu0
        %v984 = vmul.f32 %v981, 1.442695
        %v985 = vpow.pop %v984
        %986 = vst [vmem:[%s474] sm:$0xff] %v985
        %s987 = sand.u32 %s265, 1
        %s988 = scalar_lea.sflag [#allocation5], %s987
        %s989 = sand.u32 %s265, 1
        %s990 = smul.addr %s989, 8
        %s991 = scalar_lea.vmem [#allocation8], %s990
        // Predicated region
        $region61: #{tpu_custom_call.1} parent=51 // pred_check
          %p992 = pneg %p275
        $region62: #{tpu_custom_call.1} parent=51 // pred_check_branch
          %994 = sbr.rel (%p992) target = $region64
        $region63: #{tpu_custom_call.1} parent=51 // pred_region
          %s996 = ssub.s32 128, 128
          %997 = vsyncadd %s988, %s996
          %s998 = smul.addr %s30, 4
          %s999 = sadd.s32 %s31, %s998
          %s1000 = smul.addr %s999, 128
          %s1001 = scalar_lea.hbm %s8, %s1000
          %s1003 = sshll.u32 %s991, 4
          %s1004 = int_to_ptr.vmem [resolvable:$true] %s1003
          %1006 = dma.vmem_to_hbm [thread:$0]  %s1004, 128, %s1001, %s988
        $region64: #{tpu_custom_call.1} parent=51 // pred_fallthru
          _
      $region52: #{tpu_custom_call.1} parent=5 // pred_fallthru
        _
      %p1007 = scmp.le.s32.totalorder 2, %s21
      // Predicated region
      $region65: #{tpu_custom_call.1} parent=5 // pred_check
        %p1008 = pneg %p1007
      $region66: #{tpu_custom_call.1} parent=5 // pred_check_branch
        %1010 = sbr.rel (%p1008) target = $region68
      $region67: #{tpu_custom_call.1} parent=5 // pred_region
        %s1011 = ssub.s32 %s21, 2
        // Predicated region
        $region69: #{tpu_custom_call.1} parent=67 // pred_check
          %p1012 = pneg %p281
        $region70: #{tpu_custom_call.1} parent=67 // pred_check_branch
          %1014 = sbr.rel (%p1012) target = $region72
        $region71: #{tpu_custom_call.1} parent=67 // pred_region
          %s1015 = sand.u32 %s266, 1
          %s1016 = scalar_lea.sflag [#allocation5], %s1015
          %s1017 = sand.u32 %s266, 1
          %s1018 = smul.addr %s1017, 8
          %s1019 = scalar_lea.vmem [#allocation8], %s1018
          %1020 = dma.done %s1016, 128
        $region72: #{tpu_custom_call.1} parent=67 // pred_fallthru
          _
      $region68: #{tpu_custom_call.1} parent=5 // pred_fallthru
        _
    $region6: #{tpu_custom_call.1} parent=1 // loop_footer
      %s25 = sadd.s32 1, %s21
    $region7: #{tpu_custom_call.1} parent=1 // loop_footer_branch
      %20 = sbr.rel target = $region3
    $region8: #{tpu_custom_call.1} parent=1 // loop_exit
      _
    %1021 = vsyncpa [#allocation4], 1
    %s1022 = scalar_lea.sflag [#allocation4], 1
    %1023 = vsyncpa %s1022, 1
    %1024 = vsyncpa [#allocation7], 1
    %s1025 = scalar_lea.sflag [#allocation7], 1
    %1026 = vsyncpa %s1025, 1
    %1027 = vsyncpa [#allocation5], 1
    %s1028 = scalar_lea.sflag [#allocation5], 1
    %1029 = vsyncpa %s1028, 1

</llo_original>
